<compile_context>
chip_gen: v7x
topology: tpu7x:2x2x1
jax: 0.10.0
libtpu: 0.0.40
codegen_flags: <defaults>
</compile_context>

<pallas_src>
import functools

import jax
import jax.numpy as jnp
from jax.experimental import pallas as pl
from jax.experimental.pallas import tpu as pltpu

_BN_EPS = 1e-5
_VMEM = pl.BlockSpec(memory_space=pltpu.MemorySpace.VMEM)

# (cin, cout, stride-of-first-block) for resnet18 layers 1..4 (static config,
# kept out of the param pytree so branch params can be tree-stacked cleanly).
_LAYER_CFG = [(64, 64, 1), (64, 128, 2), (128, 256, 2), (256, 512, 2)]


def _round_up(x, m):
    return ((x + m - 1) // m) * m


def _choose_tk(kp):
    """Largest K tile <= 1024 that is a multiple of 128 and divides kp."""
    if kp <= 1024:
        return kp
    for cand in range(1024, 0, -128):
        if kp % cand == 0:
            return cand
    return 128


# ----------------------------------------------------------------------------
# Pallas kernels
# ----------------------------------------------------------------------------
def _make_fused_kernel(relu, has_res):
    """bf16 matmul (f32 acc) + folded-BN scale/shift + optional residual + relu."""

    def kernel(a_ref, b_ref, scale_ref, shift_ref, *rest):
        if has_res:
            res_ref, o_ref, acc_ref = rest
        else:
            o_ref, acc_ref = rest
        k = pl.program_id(2)

        @pl.when(k == 0)
        def _():
            acc_ref[...] = jnp.zeros_like(acc_ref)

        acc_ref[...] += jnp.dot(a_ref[0], b_ref[0],
                                preferred_element_type=jnp.float32)

        @pl.when(k == pl.num_programs(2) - 1)
        def _():
            out = acc_ref[...] * scale_ref[0] + shift_ref[0]
            if has_res:
                out = out + res_ref[0].astype(jnp.float32)
            if relu:
                out = jnp.maximum(out, 0.0)
            o_ref[...] = out[None]

    return kernel


@functools.partial(jax.jit, static_argnames=("relu",))
def fused_matmul(a, b, scale, shift, res, relu):
    """out[g] = relu?( (a[g] @ b[g]) * scale[g] + shift[g] [+ res[g]] ).

    a: (G, M, K)  b: (G, K, N)  scale/shift: (G, N)  res: (G, M, N) or None.
    Returns (G, M, N) float32.
    """
    G, M, K = a.shape
    N = b.shape[2]
    has_res = res is not None

    # Tiling: bf16 sublane packing -> M tiles multiple of 16, K tiles multiple of 128.
    tm = min(256, _round_up(M, 16))
    mp = _round_up(M, tm)
    kp = _round_up(K, 128)
    tk = _choose_tk(kp)

    a16 = jnp.pad(a, ((0, 0), (0, mp - M), (0, kp - K))).astype(jnp.bfloat16)
    b16 = jnp.pad(b, ((0, 0), (0, kp - K), (0, 0))).astype(jnp.bfloat16)
    scale = scale.reshape(G, 1, N).astype(jnp.float32)
    shift = shift.reshape(G, 1, N).astype(jnp.float32)

    in_specs = [
        pl.BlockSpec((1, tm, tk), lambda g, i, k: (g, i, k)),
        pl.BlockSpec((1, tk, N), lambda g, i, k: (g, k, 0)),
        pl.BlockSpec((1, 1, N), lambda g, i, k: (g, 0, 0)),
        pl.BlockSpec((1, 1, N), lambda g, i, k: (g, 0, 0)),
    ]
    args = [a16, b16, scale, shift]
    if has_res:
        r16 = jnp.pad(res, ((0, 0), (0, mp - M), (0, 0))).astype(jnp.bfloat16)
        in_specs.append(pl.BlockSpec((1, tm, N), lambda g, i, k: (g, i, 0)))
        args.append(r16)

    out = pl.pallas_call(
        _make_fused_kernel(relu, has_res),
        out_shape=jax.ShapeDtypeStruct((G, mp, N), jnp.float32),
        grid=(G, mp // tm, kp // tk),
        in_specs=in_specs,
        out_specs=pl.BlockSpec((1, tm, N), lambda g, i, k: (g, i, 0)),
        scratch_shapes=[pltpu.VMEM((tm, N), jnp.float32)],
        compiler_params=pltpu.CompilerParams(
            dimension_semantics=("parallel", "parallel", "arbitrary"),
            vmem_limit_bytes=32 * 1024 * 1024,
        ),
    )(*args)
    return out[:, :M, :]


def _max_pool_kernel(x_ref, o_ref):
    # Running elementwise max over the window planes (VPU, no XLU reduce).
    m = x_ref[0]
    for t in range(1, x_ref.shape[0]):
        m = jnp.maximum(m, x_ref[t])
    o_ref[...] = m


@jax.jit
def max_over_window(planes):
    """planes: (T, M, C) -> (M, C) elementwise max over the T window taps."""
    T, M, C = planes.shape
    tm = min(512, _round_up(M, 8))
    mp = _round_up(M, tm)
    x = jnp.pad(planes, ((0, 0), (0, mp - M), (0, 0)))
    out = pl.pallas_call(
        _max_pool_kernel,
        out_shape=jax.ShapeDtypeStruct((mp, C), jnp.float32),
        grid=(mp // tm,),
        in_specs=[pl.BlockSpec((T, tm, C), lambda i: (0, i, 0))],
        out_specs=pl.BlockSpec((tm, C), lambda i: (i, 0)),
        compiler_params=pltpu.CompilerParams(dimension_semantics=("parallel",)),
    )(x)
    return out[:M]


def _mean_kernel(x_ref, o_ref):
    o_ref[...] = jnp.mean(x_ref[...], axis=1, keepdims=True)


@jax.jit
def global_avg_pool(x):
    """x: (B, H*W, C) -> (B, C)   (AdaptiveAvgPool2d(1) + squeeze)."""
    B, HW, C = x.shape
    out = pl.pallas_call(
        _mean_kernel,
        out_shape=jax.ShapeDtypeStruct((B, 1, C), jnp.float32),
        grid=(B,),
        in_specs=[pl.BlockSpec((1, HW, C), lambda i: (i, 0, 0))],
        out_specs=pl.BlockSpec((1, 1, C), lambda i: (i, 0, 0)),
        compiler_params=pltpu.CompilerParams(dimension_semantics=("parallel",)),
    )(x)
    return out[:, 0, :]


def _classifier_kernel(x_ref, w1_ref, b1_ref, w2_ref, b2_ref, o_ref):
    h = jnp.dot(x_ref[...], w1_ref[...], preferred_element_type=jnp.float32)
    h = jnp.maximum(h + b1_ref[...], 0.0)
    # TODO(synk): nn.Dropout(0.3) treated as identity (eval mode).
    out = jnp.dot(h.astype(jnp.bfloat16), w2_ref[...],
                  preferred_element_type=jnp.float32)
    o_ref[...] = out + b2_ref[...]


@jax.jit
def classifier_forward(feat, p):
    """feat: (B, 1024) -> (B, 2).  Linear(1024,256)+ReLU+Dropout+Linear(256,2)."""
    B = feat.shape[0]
    return pl.pallas_call(
        _classifier_kernel,
        out_shape=jax.ShapeDtypeStruct((B, 2), jnp.float32),
        in_specs=[_VMEM] * 5,
        out_specs=_VMEM,
    )(feat.astype(jnp.bfloat16),
      p["w1"].T.astype(jnp.bfloat16), p["b1"].reshape(1, -1),
      p["w2"].T.astype(jnp.bfloat16), p["b2"].reshape(1, -1))


# ----------------------------------------------------------------------------
# JAX glue: im2col, BN folding, dual-branch ResNet-18 structure
# ----------------------------------------------------------------------------
def _extract_patches(x, kh, kw, stride, padding, pad_value=0.0):
    """x: (G, N, H, W, C) -> (G, N, Ho, Wo, kh*kw, C) patches (data movement)."""
    # TODO(synk): im2col is done in XLA (HBM materialization); at larger
    # resolutions this should move inside the matmul kernel as 9 shifted taps.
    G, N, H, W, C = x.shape
    xp = jnp.pad(x, ((0, 0), (0, 0), (padding, padding), (padding, padding), (0, 0)),
                 constant_values=pad_value)
    Ho = (H + 2 * padding - kh) // stride + 1
    Wo = (W + 2 * padding - kw) // stride + 1
    pats = []
    for i in range(kh):
        for j in range(kw):
            pats.append(xp[:, :, i:i + stride * Ho:stride, j:j + stride * Wo:stride, :])
    return jnp.stack(pats, axis=4), Ho, Wo


def _fold_bn(bn):
    scale = bn["gamma"] / jnp.sqrt(bn["var"] + _BN_EPS)
    shift = bn["beta"] - bn["mean"] * scale
    return scale, shift


def conv_bn(x, w, bn, stride, padding, relu, residual=None):
    """Conv2d(bias=False)+BN(eval) [+residual] [+ReLU], both branches at once.

    x: (G, N, H, W, Cin); w: (G, Cout, Cin, kh, kw); bn fields: (G, Cout).
    """
    G, N = x.shape[0], x.shape[1]
    cout, cin, kh, kw = w.shape[1:]
    pats, Ho, Wo = _extract_patches(x, kh, kw, stride, padding)
    A = pats.reshape(G, N * Ho * Wo, kh * kw * cin)
    B = jnp.transpose(w, (0, 3, 4, 2, 1)).reshape(G, kh * kw * cin, cout)
    scale, shift = _fold_bn(bn)
    res = None if residual is None else residual.reshape(G, N * Ho * Wo, cout)
    out = fused_matmul(A, B, scale, shift, res, relu=relu)
    return out.reshape(G, N, Ho, Wo, cout)


def max_pool_3x3_s2(x):
    G, N, H, W, C = x.shape
    xp = jnp.pad(x, ((0, 0), (0, 0), (1, 1), (1, 1), (0, 0)),
                 constant_values=-jnp.inf)
    Ho = (H + 2 - 3) // 2 + 1
    Wo = (W + 2 - 3) // 2 + 1
    planes = []
    for i in range(3):
        for j in range(3):
            planes.append(
                xp[:, :, i:i + 2 * Ho:2, j:j + 2 * Wo:2, :].reshape(G * N * Ho * Wo, C))
    out = max_over_window(jnp.stack(planes, axis=0))     # (M, C)
    return out.reshape(G, N, Ho, Wo, C)


def basic_block(x, p, stride):
    identity = x
    h = conv_bn(x, p["conv1_w"], p["bn1"], stride=stride, padding=1, relu=True)
    if "down_w" in p:
        identity = conv_bn(x, p["down_w"], p["down_bn"],
                           stride=stride, padding=0, relu=False)
    # out = relu(bn2(conv2(h)) + identity); residual add fused in the epilogue.
    return conv_bn(h, p["conv2_w"], p["bn2"], stride=1, padding=1, relu=True,
                   residual=identity)


def dual_branch_forward(org_img, thermal_img, params):
    # Stack the two branches along a leading axis: (2, N, 3, H, W) -> NHWC.
    x = jnp.stack([org_img, thermal_img], axis=0)
    x = jnp.transpose(x, (0, 1, 3, 4, 2))                  # (2, N, H, W, 3)
    p = params["stacked"]

    h = conv_bn(x, p["conv1_w"], p["bn1"], stride=2, padding=3, relu=True)
    h = max_pool_3x3_s2(h)
    for li, (_, _, stride) in enumerate(_LAYER_CFG):
        blocks = p["layers"][li]
        h = basic_block(h, blocks[0], stride)
        h = basic_block(h, blocks[1], 1)

    G, N, H, W, C = h.shape
    feat = global_avg_pool(h.reshape(G * N, H * W, C)).reshape(G, N, C)
    combined = jnp.concatenate([feat[0], feat[1]], axis=1)  # (N, 1024)
    return classifier_forward(combined, params["cls"])      # (N, 2)


# ----------------------------------------------------------------------------
# Deterministic parameter init (ResNet-18 shapes; no checkpoint load)
# ----------------------------------------------------------------------------
def _init_conv(key, cout, cin, kh, kw):
    fan_in = cin * kh * kw
    return jax.random.normal(key, (cout, cin, kh, kw), jnp.float32) / jnp.sqrt(float(fan_in))


def _init_bn(key, c):
    k1, k2, k3 = jax.random.split(key, 3)
    return dict(gamma=1.0 + 0.05 * jax.random.normal(k1, (c,), jnp.float32),
                beta=0.05 * jax.random.normal(k2, (c,), jnp.float32),
                mean=0.05 * jax.random.normal(k3, (c,), jnp.float32),
                var=jnp.ones((c,), jnp.float32))


def _init_block(key, cin, cout, stride):
    ks = jax.random.split(key, 6)
    p = dict(conv1_w=_init_conv(ks[0], cout, cin, 3, 3), bn1=_init_bn(ks[1], cout),
             conv2_w=_init_conv(ks[2], cout, cout, 3, 3), bn2=_init_bn(ks[3], cout))
    if stride != 1 or cin != cout:
        p["down_w"] = _init_conv(ks[4], cout, cin, 1, 1)
        p["down_bn"] = _init_bn(ks[5], cout)
    return p


def _init_branch(key):
    ks = jax.random.split(key, 10)
    p = dict(conv1_w=_init_conv(ks[0], 64, 3, 7, 7), bn1=_init_bn(ks[1], 64))
    layers, ki = [], 2
    for cin, cout, stride in _LAYER_CFG:
        layers.append([_init_block(ks[ki], cin, cout, stride),
                       _init_block(ks[ki + 1], cout, cout, 1)])
        ki += 2
    p["layers"] = layers
    return p


def init_params(key):
    # TODO(synk): pretrained ImageNet weights replaced with deterministic random init.
    k_org, k_th, k1, k2, k3, k4 = jax.random.split(key, 6)
    org = _init_branch(k_org)
    thermal = _init_branch(k_th)
    stacked = jax.tree_util.tree_map(lambda a, b: jnp.stack([a, b], axis=0),
                                     org, thermal)
    cls = dict(w1=jax.random.normal(k1, (256, 1024), jnp.float32) / jnp.sqrt(1024.0),
               b1=0.01 * jax.random.normal(k2, (256,), jnp.float32),
               w2=jax.random.normal(k3, (2, 256), jnp.float32) / jnp.sqrt(256.0),
               b2=0.01 * jax.random.normal(k4, (2,), jnp.float32))
    return dict(stacked=stacked, cls=cls)


# ----------------------------------------------------------------------------
if __name__ == "__main__":
    key = jax.random.PRNGKey(0)
    k_p, k_o, k_t = jax.random.split(key, 3)
    params = init_params(k_p)

    # Small inputs consistent with the module: NCHW RGB images, batch=2, 32x32.
    org_img = jax.random.normal(k_o, (2, 3, 32, 32), jnp.float32)
    thermal_img = jax.random.normal(k_t, (2, 3, 32, 32), jnp.float32)

    fwd = jax.jit(dual_branch_forward)
    out = jax.block_until_ready(fwd(org_img, thermal_img, params))
    assert out.shape == (2, 2) and out.dtype == jnp.float32
    print("KERNEL_OK")
</pallas_src>

<mosaic_0001>
module attributes {stable_mosaic.version = 11 : i64} {
  func.func @kernel(%arg0: i32, %arg1: i32, %arg2: i32, %arg3: memref<1x256x256xbf16, #tpu.memory_space<vmem>>, %arg4: memref<1x256x64xbf16, #tpu.memory_space<vmem>>, %arg5: memref<1x1x64xf32, #tpu.memory_space<vmem>>, %arg6: memref<1x1x64xf32, #tpu.memory_space<vmem>>, %arg7: memref<1x256x64xf32, #tpu.memory_space<vmem>>, %arg8: memref<256x64xf32, #tpu.memory_space<vmem>>) attributes {dimension_semantics = [#tpu.dimension_semantics<parallel>, #tpu.dimension_semantics<parallel>, #tpu.dimension_semantics<arbitrary>], iteration_bounds = array<i64: 2, 2, 1>, scalar_prefetch = 0 : i64, scratch_operands = 1 : i64, tpu.core_type = #tpu.core_type<tc>, window_params = [{transform_indices = @transform_0, window_bounds = array<i64: 1, 256, 256>}, {transform_indices = @transform_1, window_bounds = array<i64: 1, 256, 64>}, {transform_indices = @transform_2, window_bounds = array<i64: 1, 1, 64>}, {transform_indices = @transform_3, window_bounds = array<i64: 1, 1, 64>}, {transform_indices = @transform_4, window_bounds = array<i64: 1, 256, 64>}]} {
    %c0_i32 = arith.constant 0 : i32
    %0 = arith.cmpi eq, %arg2, %c0_i32 : i32
    %1 = arith.extui %0 : i1 to i32
    %c0_i32_0 = arith.constant 0 : i32
    %2 = arith.cmpi ne, %1, %c0_i32_0 : i32
    scf.if %2 {
      %cst_12 = arith.constant 0.000000e+00 : f32
      %14 = vector.broadcast %cst_12 : f32 to vector<256x64xf32>
      %c0_13 = arith.constant 0 : index
      %c0_14 = arith.constant 0 : index
      %15 = vector.load %arg8[%c0_13, %c0_14] : memref<256x64xf32, #tpu.memory_space<vmem>>, vector<256x64xf32>
      tpu.vector_store %arg8[%c0_13, %c0_14], %14 {strides = array<i32>} : memref<256x64xf32, #tpu.memory_space<vmem>>, vector<256x64xf32>,
    } else {
    }
    %c0 = arith.constant 0 : index
    %c0_1 = arith.constant 0 : index
    %3 = vector.load %arg8[%c0, %c0_1] : memref<256x64xf32, #tpu.memory_space<vmem>>, vector<256x64xf32>
    %c0_2 = arith.constant 0 : index
    %c0_3 = arith.constant 0 : index
    %c0_4 = arith.constant 0 : index
    %4 = vector.load %arg3[%c0_2, %c0_3, %c0_4] : memref<1x256x256xbf16, #tpu.memory_space<vmem>>, vector<1x256x256xbf16>
    %5 = vector.shape_cast %4 : vector<1x256x256xbf16> to vector<256x256xbf16>
    %c0_5 = arith.constant 0 : index
    %c0_6 = arith.constant 0 : index
    %c0_7 = arith.constant 0 : index
    %6 = vector.load %arg4[%c0_5, %c0_6, %c0_7] : memref<1x256x64xbf16, #tpu.memory_space<vmem>>, vector<1x256x64xbf16>
    %7 = vector.shape_cast %6 : vector<1x256x64xbf16> to vector<256x64xbf16>
    %cst = arith.constant dense<0.000000e+00> : vector<256x64xf32>
    %8 = tpu.matmul %5, %7, %cst {dimension_numbers = #tpu.dot_dimension_numbers<[1], [0], [0], [1], [0, 0, 1, 1], [], []>} : vector<256x256xbf16>, vector<256x64xbf16>, vector<256x64xf32> -> vector<256x64xf32>
    %9 = arith.addf %3, %8 : vector<256x64xf32>
    %c0_8 = arith.constant 0 : index
    %c0_9 = arith.constant 0 : index
    %10 = vector.load %arg8[%c0_8, %c0_9] : memref<256x64xf32, #tpu.memory_space<vmem>>, vector<256x64xf32>
    tpu.vector_store %arg8[%c0_8, %c0_9], %9 {strides = array<i32>} : memref<256x64xf32, #tpu.memory_space<vmem>>, vector<256x64xf32>,
    %c0_i32_10 = arith.constant 0 : i32
    %11 = arith.cmpi eq, %arg2, %c0_i32_10 : i32
    %12 = arith.extui %11 : i1 to i32
    %c0_i32_11 = arith.constant 0 : i32
    %13 = arith.cmpi ne, %12, %c0_i32_11 : i32
    scf.if %13 {
      %c0_12 = arith.constant 0 : index
      %c0_13 = arith.constant 0 : index
      %14 = vector.load %arg8[%c0_12, %c0_13] : memref<256x64xf32, #tpu.memory_space<vmem>>, vector<256x64xf32>
      %c0_14 = arith.constant 0 : index
      %c0_15 = arith.constant 0 : index
      %c0_16 = arith.constant 0 : index
      %15 = vector.load %arg5[%c0_14, %c0_15, %c0_16] : memref<1x1x64xf32, #tpu.memory_space<vmem>>, vector<1x1x64xf32>
      %16 = vector.shape_cast %15 : vector<1x1x64xf32> to vector<1x64xf32>
      %17 = vector.broadcast %16 : vector<1x64xf32> to vector<256x64xf32>
      %18 = arith.mulf %14, %17 : vector<256x64xf32>
      %c0_17 = arith.constant 0 : index
      %c0_18 = arith.constant 0 : index
      %c0_19 = arith.constant 0 : index
      %19 = vector.load %arg6[%c0_17, %c0_18, %c0_19] : memref<1x1x64xf32, #tpu.memory_space<vmem>>, vector<1x1x64xf32>
      %20 = vector.shape_cast %19 : vector<1x1x64xf32> to vector<1x64xf32>
      %21 = vector.broadcast %20 : vector<1x64xf32> to vector<256x64xf32>
      %22 = arith.addf %18, %21 : vector<256x64xf32>
      %cst_20 = arith.constant 0.000000e+00 : f32
      %23 = vector.broadcast %cst_20 : f32 to vector<256x64xf32>
      %24 = arith.maximumf %22, %23 : vector<256x64xf32>
      %25 = vector.shape_cast %24 : vector<256x64xf32> to vector<1x256x64xf32>
      %c0_21 = arith.constant 0 : index
      %c0_22 = arith.constant 0 : index
      %c0_23 = arith.constant 0 : index
      %26 = vector.load %arg7[%c0_21, %c0_22, %c0_23] : memref<1x256x64xf32, #tpu.memory_space<vmem>>, vector<1x256x64xf32>
      tpu.vector_store %arg7[%c0_21, %c0_22, %c0_23], %25 {strides = array<i32>} : memref<1x256x64xf32, #tpu.memory_space<vmem>>, vector<1x256x64xf32>,
    } else {
    }
    return
  }
  func.func @transform_0(%arg0: i32, %arg1: i32, %arg2: i32) -> (i32, i32, i32) {
    %c0_i32 = arith.constant 0 : i32
    return %arg0, %arg1, %arg2 : i32, i32, i32
  }
  func.func @transform_1(%arg0: i32, %arg1: i32, %arg2: i32) -> (i32, i32, i32) {
    %c0_i32 = arith.constant 0 : i32
    %c0_i32_0 = arith.constant 0 : i32
    return %arg0, %arg2, %c0_i32 : i32, i32, i32
  }
  func.func @transform_2(%arg0: i32, %arg1: i32, %arg2: i32) -> (i32, i32, i32) {
    %c0_i32 = arith.constant 0 : i32
    %c0_i32_0 = arith.constant 0 : i32
    %c0_i32_1 = arith.constant 0 : i32
    return %arg0, %c0_i32, %c0_i32_0 : i32, i32, i32
  }
  func.func @transform_3(%arg0: i32, %arg1: i32, %arg2: i32) -> (i32, i32, i32) {
    %c0_i32 = arith.constant 0 : i32
    %c0_i32_0 = arith.constant 0 : i32
    %c0_i32_1 = arith.constant 0 : i32
    return %arg0, %c0_i32, %c0_i32_0 : i32, i32, i32
  }
  func.func @transform_4(%arg0: i32, %arg1: i32, %arg2: i32) -> (i32, i32, i32) {
    %c0_i32 = arith.constant 0 : i32
    %c0_i32_0 = arith.constant 0 : i32
    return %arg0, %arg1, %c0_i32 : i32, i32, i32
  }
}

</mosaic_0001>

<llo_original>
// kernel: fused_matmul.1
$region0: #{fused_matmul.1}
  #allocation0 [shape = 'u32[]', space=smem, size = 0x4, offset = 0x4, fixed_abs, tag = 'smem constant byte address 0x4 - core index']
  #allocation1 [shape = 'u32[144,128]{1,0:T(1,128)}', space=vmem, size = 0x12000, scoped, tag = 'internal scratch']
  #allocation2 [shape = 'f32[256,64]{1,0:T(8,128)}', space=vmem, size = 0x20000, scoped, tag = 'scratch operand']
  %s0 = inlined_call_operand.vmem [shape: bf16[2,512,256], index: 0, kind: input, shape index: {}]
  %s1 = inlined_call_operand.vmem [shape: bf16[2,256,64], index: 1, kind: input, shape index: {}]
  %s2 = inlined_call_operand.vmem [shape: f32[2,1,64], index: 2, kind: input, shape index: {}]
  %s3 = inlined_call_operand.vmem [shape: f32[2,1,64], index: 3, kind: input, shape index: {}]
  %s4 = inlined_call_operand.vmem [shape: f32[2,512,64], index: 4, kind: output, shape index: {}]
  %s5 = sld [smem:[#allocation0]]
  $region57: #{fused_matmul.1} parent=0
    _
  %s7 = ssub.s32 1, %s5
  %s8 = scalar_select 0, %s7, %s5
  loop: start=0, step=1, limit=6
  $region2: #{fused_matmul.1} parent=0 // loop_pre_header
    _
  $region3: #{fused_matmul.1} parent=0 // loop_header
    %s10 = sphi 0, %s14
    %p11 = scmp.ge.s32.totalorder %s10, 6
    %s17 = sphi 0, %s36
    %s18 = sphi 0, %s32
    %s19 = sphi 0, %s28
    %s20 = sphi 0, %s17
    %s21 = sphi 0, %s18
    %s22 = sphi 0, %s19
    %s23 = sphi 0, %s20
    %s24 = sphi 0, %s21
    %s25 = sphi 0, %s22
    %s43 = sphi 0, %s45
    %s46 = sphi 0, %s43
    %s47 = sphi 0, %s46
    %s63 = sphi 0, %s47
    %s71 = sphi 0, %s73
    %s74 = sphi 0, %s71
    %s75 = sphi 0, %s74
    %s91 = sphi 0, %s75
    %s97 = sphi 0, %s99
    %s100 = sphi 0, %s97
    %s101 = sphi 0, %s100
    %s117 = sphi 0, %s101
    %s123 = sphi 0, %s125
    %s126 = sphi 0, %s123
    %s127 = sphi 0, %s126
    %s143 = sphi 0, %s127
    %s151 = sphi 0, %s153
    %s154 = sphi 0, %s151
    %s155 = sphi 0, %s154
    %s171 = sphi 0, %s155
  $region4: #{fused_matmul.1} parent=0 // loop_header_branch
    %13 = sbr.rel (%p11) target = $region8
  $region5: #{fused_matmul.1} parent=0 // loop_body
    %s15 = ssub.s32 %s10, 1
    %s16 = ssub.s32 %s10, 2
    %s26 = sadd.s32 1, %s19
    %p27 = scmp.ge.s32.totalorder %s26, 1
    %s28 = scalar_select %p27, 0, %s26
    %s29 = sadd.s32 1, %s18
    %s30 = scalar_select %p27, %s29, %s18
    %p31 = scmp.ge.s32.totalorder %s30, 2
    %s32 = scalar_select %p31, 0, %s30
    %s33 = sadd.s32 1, %s17
    %s34 = scalar_select %p31, %s33, %s17
    %p35 = scmp.ge.s32.totalorder %s34, 2
    %s36 = scalar_select %p35, 0, %s34
    %s37 = ssub.s32 %s17, %s36
    %s38 = ssub.s32 %s18, %s32
    %s39 = sor.u32 %s37, %s38
    %s40 = ssub.s32 %s19, %s28
    %s41 = sor.u32 %s39, %s40
    %p42 = scmp.eq.s32.totalorder %s41, 0
    %s44 = sadd.s32 %s43, 1
    %s45 = scalar_select %p42, %s43, %s44
    %p48 = pneg %p42
    %p49 = scmp.eq.s32.totalorder %s10, 3
    %p50 = por %p48, %p49
    %p51 = scmp.ne.s32.totalorder %s43, %s46
    %p52 = scmp.eq.s32.totalorder %s10, 0
    %p53 = por %p51, %p52
    %p54 = scmp.ne.s32.totalorder %s43, %s46
    %p55 = scmp.eq.s32.totalorder %s15, 3
    %p56 = por %p54, %p55
    %p57 = scmp.ne.s32.totalorder %s46, %s47
    %p58 = scmp.eq.s32.totalorder %s15, 0
    %p59 = por %p57, %p58
    %p60 = scmp.ne.s32.totalorder %s46, %s47
    %p61 = scmp.eq.s32.totalorder %s16, 3
    %p62 = por %p60, %p61
    %p64 = scmp.ne.s32.totalorder %s47, %s63
    %p65 = scmp.eq.s32.totalorder %s16, 0
    %p66 = por %p64, %p65
    %s67 = ssub.s32 %s17, %s36
    %s68 = ssub.s32 %s19, %s28
    %s69 = sor.u32 %s67, %s68
    %p70 = scmp.eq.s32.totalorder %s69, 0
    %s72 = sadd.s32 %s71, 1
    %s73 = scalar_select %p70, %s71, %s72
    %p76 = pneg %p70
    %p77 = scmp.eq.s32.totalorder %s10, 3
    %p78 = por %p76, %p77
    %p79 = scmp.ne.s32.totalorder %s71, %s74
    %p80 = scmp.eq.s32.totalorder %s10, 0
    %p81 = por %p79, %p80
    %p82 = scmp.ne.s32.totalorder %s71, %s74
    %p83 = scmp.eq.s32.totalorder %s15, 3
    %p84 = por %p82, %p83
    %p85 = scmp.ne.s32.totalorder %s74, %s75
    %p86 = scmp.eq.s32.totalorder %s15, 0
    %p87 = por %p85, %p86
    %p88 = scmp.ne.s32.totalorder %s74, %s75
    %p89 = scmp.eq.s32.totalorder %s16, 3
    %p90 = por %p88, %p89
    %p92 = scmp.ne.s32.totalorder %s75, %s91
    %p93 = scmp.eq.s32.totalorder %s16, 0
    %p94 = por %p92, %p93
    %s95 = ssub.s32 %s17, %s36
    %p96 = scmp.eq.s32.totalorder %s95, 0
    %s98 = sadd.s32 %s97, 1
    %s99 = scalar_select %p96, %s97, %s98
    %p102 = pneg %p96
    %p103 = scmp.eq.s32.totalorder %s10, 3
    %p104 = por %p102, %p103
    %p105 = scmp.ne.s32.totalorder %s97, %s100
    %p106 = scmp.eq.s32.totalorder %s10, 0
    %p107 = por %p105, %p106
    %p108 = scmp.ne.s32.totalorder %s97, %s100
    %p109 = scmp.eq.s32.totalorder %s15, 3
    %p110 = por %p108, %p109
    %p111 = scmp.ne.s32.totalorder %s100, %s101
    %p112 = scmp.eq.s32.totalorder %s15, 0
    %p113 = por %p111, %p112
    %p114 = scmp.ne.s32.totalorder %s100, %s101
    %p115 = scmp.eq.s32.totalorder %s16, 3
    %p116 = por %p114, %p115
    %p118 = scmp.ne.s32.totalorder %s101, %s117
    %p119 = scmp.eq.s32.totalorder %s16, 0
    %p120 = por %p118, %p119
    %s121 = ssub.s32 %s17, %s36
    %p122 = scmp.eq.s32.totalorder %s121, 0
    %s124 = sadd.s32 %s123, 1
    %s125 = scalar_select %p122, %s123, %s124
    %p128 = pneg %p122
    %p129 = scmp.eq.s32.totalorder %s10, 3
    %p130 = por %p128, %p129
    %p131 = scmp.ne.s32.totalorder %s123, %s126
    %p132 = scmp.eq.s32.totalorder %s10, 0
    %p133 = por %p131, %p132
    %p134 = scmp.ne.s32.totalorder %s123, %s126
    %p135 = scmp.eq.s32.totalorder %s15, 3
    %p136 = por %p134, %p135
    %p137 = scmp.ne.s32.totalorder %s126, %s127
    %p138 = scmp.eq.s32.totalorder %s15, 0
    %p139 = por %p137, %p138
    %p140 = scmp.ne.s32.totalorder %s126, %s127
    %p141 = scmp.eq.s32.totalorder %s16, 3
    %p142 = por %p140, %p141
    %p144 = scmp.ne.s32.totalorder %s127, %s143
    %p145 = scmp.eq.s32.totalorder %s16, 0
    %p146 = por %p144, %p145
    %s147 = ssub.s32 %s17, %s36
    %s148 = ssub.s32 %s18, %s32
    %s149 = sor.u32 %s147, %s148
    %p150 = scmp.eq.s32.totalorder %s149, 0
    %s152 = sadd.s32 %s151, 1
    %s153 = scalar_select %p150, %s151, %s152
    %p156 = pneg %p150
    %p157 = scmp.eq.s32.totalorder %s10, 3
    %p158 = por %p156, %p157
    %p159 = scmp.ne.s32.totalorder %s151, %s154
    %p160 = scmp.eq.s32.totalorder %s10, 0
    %p161 = por %p159, %p160
    %p162 = scmp.ne.s32.totalorder %s151, %s154
    %p163 = scmp.eq.s32.totalorder %s15, 3
    %p164 = por %p162, %p163
    %p165 = scmp.ne.s32.totalorder %s154, %s155
    %p166 = scmp.eq.s32.totalorder %s15, 0
    %p167 = por %p165, %p166
    %p168 = scmp.ne.s32.totalorder %s154, %s155
    %p169 = scmp.eq.s32.totalorder %s16, 3
    %p170 = por %p168, %p169
    %p172 = scmp.ne.s32.totalorder %s155, %s171
    %p173 = scmp.eq.s32.totalorder %s16, 0
    %p174 = por %p172, %p173
    %p175 = scmp.le.s32.totalorder 1, %s10
    %p176 = scmp.lt.s32.totalorder %s10, 5
    %p177 = pnand %p175, %p176
    %p178 = pneg %p177
    // Predicated region
    $region9: #{fused_matmul.1} parent=5 // pred_check
      _
    $region10: #{fused_matmul.1} parent=5 // pred_check_branch
      %180 = sbr.rel (%p177) target = $region12
    $region11: #{fused_matmul.1} parent=5 // pred_region
      %s181 = ssub.s32 %s10, 1
    $region12: #{fused_matmul.1} parent=5 // pred_fallthru
      _
    %p182 = scmp.lt.s32.totalorder %s10, 4
    // Predicated region
    $region13: #{fused_matmul.1} parent=5 // pred_check
      %p183 = pneg %p182
    $region14: #{fused_matmul.1} parent=5 // pred_check_branch
      %185 = sbr.rel (%p183) target = $region16
    $region15: #{fused_matmul.1} parent=5 // pred_region
      // Predicated region
      $region17: #{fused_matmul.1} parent=15 // pred_check
        %p186 = pneg %p53
      $region18: #{fused_matmul.1} parent=15 // pred_check_branch
        %188 = sbr.rel (%p186) target = $region20
      $region19: #{fused_matmul.1} parent=15 // pred_region
        %s189 = smul.u32 32, %s18
        %s190 = smul.u32 2, %s19
        %p191 = scmp.lt.s32.totalorder %s17, 1
        %s192 = scalar_select %p191, %s17, 1
        %p193 = scmp.lt.s32.totalorder %s189, 63
        %s194 = scalar_select %p193, %s189, 63
        %p195 = scmp.lt.s32.totalorder %s190, 1
        %s196 = scalar_select %p195, %s190, 1
        %s197 = smul.addr %s194, 2
        %s198 = sadd.s32 %s196, %s197
        %s199 = smul.addr %s192, 128
        %s200 = sadd.s32 %s198, %s199
        %s201 = smul.addr %s200, 4
        %s202 = scalar_lea.vmem %s0, %s201
        %s203 = smul.u32 32, %s18
        %s204 = smul.u32 2, %s19
      $region20: #{fused_matmul.1} parent=15 // pred_fallthru
        _
      // Predicated region
      $region21: #{fused_matmul.1} parent=15 // pred_check
        %p205 = pneg %p81
      $region22: #{fused_matmul.1} parent=15 // pred_check_branch
        %207 = sbr.rel (%p205) target = $region24
      $region23: #{fused_matmul.1} parent=15 // pred_region
        %s208 = smul.u32 32, %s19
        %p209 = scmp.lt.s32.totalorder %s17, 1
        %s210 = scalar_select %p209, %s17, 1
        %p211 = scmp.lt.s32.totalorder %s208, 31
        %s212 = scalar_select %p211, %s208, 31
        %s213 = smul.addr %s210, 32
        %s214 = sadd.s32 %s212, %s213
        %s215 = smul.addr %s214, 4
        %s216 = scalar_lea.vmem %s1, %s215
        %s217 = smul.u32 32, %s19
      $region24: #{fused_matmul.1} parent=15 // pred_fallthru
        _
      // Predicated region
      $region25: #{fused_matmul.1} parent=15 // pred_check
        %p218 = pneg %p107
      $region26: #{fused_matmul.1} parent=15 // pred_check_branch
        %220 = sbr.rel (%p218) target = $region28
      $region27: #{fused_matmul.1} parent=15 // pred_region
        %p221 = scmp.lt.s32.totalorder %s17, 1
        %s222 = scalar_select %p221, %s17, 1
        %s223 = scalar_lea.vmem %s2, %s222
      $region28: #{fused_matmul.1} parent=15 // pred_fallthru
        _
      // Predicated region
      $region29: #{fused_matmul.1} parent=15 // pred_check
        %p224 = pneg %p133
      $region30: #{fused_matmul.1} parent=15 // pred_check_branch
        %226 = sbr.rel (%p224) target = $region32
      $region31: #{fused_matmul.1} parent=15 // pred_region
        %p227 = scmp.lt.s32.totalorder %s17, 1
        %s228 = scalar_select %p227, %s17, 1
        %s229 = scalar_lea.vmem %s3, %s228
      $region32: #{fused_matmul.1} parent=15 // pred_fallthru
        _
    $region16: #{fused_matmul.1} parent=5 // pred_fallthru
      _
    %p230 = scmp.le.s32.totalorder 1, %s10
    %p231 = scmp.lt.s32.totalorder %s10, 5
    %p232 = pnand %p230, %p231
    %p233 = pneg %p232
    // Predicated region
    $region33: #{fused_matmul.1} parent=5 // pred_check
      _
    $region34: #{fused_matmul.1} parent=5 // pred_check_branch
      %235 = sbr.rel (%p232) target = $region36
    $region35: #{fused_matmul.1} parent=5 // pred_region
      %s236 = ssub.s32 %s10, 1
      %s237 = smul.u32 32, %s21
      %s238 = smul.u32 2, %s22
      %p239 = scmp.lt.s32.totalorder %s20, 1
      %s240 = scalar_select %p239, %s20, 1
      %p241 = scmp.lt.s32.totalorder %s237, 63
      %s242 = scalar_select %p241, %s237, 63
      %p243 = scmp.lt.s32.totalorder %s238, 1
      %s244 = scalar_select %p243, %s238, 1
      %s245 = smul.addr %s242, 2
      %s246 = sadd.s32 %s244, %s245
      %s247 = smul.addr %s240, 128
      %s248 = sadd.s32 %s246, %s247
      %s249 = smul.addr %s248, 4
      %s250 = scalar_lea.vmem %s0, %s249
      %p251 = pneg %p59
      %p252 = pneg %p56
      %s253 = smul.u32 32, %s22
      %p254 = scmp.lt.s32.totalorder %s20, 1
      %s255 = scalar_select %p254, %s20, 1
      %p256 = scmp.lt.s32.totalorder %s253, 31
      %s257 = scalar_select %p256, %s253, 31
      %s258 = smul.addr %s255, 32
      %s259 = sadd.s32 %s257, %s258
      %s260 = smul.addr %s259, 4
      %s261 = scalar_lea.vmem %s1, %s260
      %p262 = pneg %p87
      %p263 = pneg %p84
      %p264 = scmp.lt.s32.totalorder %s20, 1
      %s265 = scalar_select %p264, %s20, 1
      %s266 = scalar_lea.vmem %s2, %s265
      %p267 = pneg %p113
      %p268 = pneg %p110
      %p269 = scmp.lt.s32.totalorder %s20, 1
      %s270 = scalar_select %p269, %s20, 1
      %s271 = scalar_lea.vmem %s3, %s270
      %p272 = pneg %p139
      %p273 = pneg %p136
      %p274 = pneg %p167
      %p275 = pneg %p164
      %s276 = smul.u32 32, %s21
      %p277 = scmp.lt.s32.totalorder %s20, 1
      %s278 = scalar_select %p277, %s20, 1
      %p279 = scmp.lt.s32.totalorder %s276, 63
      %s280 = scalar_select %p279, %s276, 63
      %s281 = smul.addr %s278, 64
      %s282 = sadd.s32 %s280, %s281
      %s283 = smul.addr %s282, 8
      %s284 = scalar_lea.vmem %s4, %s283
      %s285 = smul.u32 32, %s21
      %s286 = smul.u32 2, %s22
      %p287 = scmp.lt.s32.totalorder %s20, 1
      %s288 = scalar_select %p287, %s20, 1
      %p289 = scmp.lt.s32.totalorder %s285, 63
      %s290 = scalar_select %p289, %s285, 63
      %p291 = scmp.lt.s32.totalorder %s286, 1
      %s292 = scalar_select %p291, %s286, 1
      %s293 = smul.addr %s290, 2
      %s294 = sadd.s32 %s292, %s293
      %s295 = smul.addr %s288, 128
      %s296 = sadd.s32 %s294, %s295
      %s297 = smul.addr %s296, 4
      %s298 = scalar_lea.vmem %s0, %s297
      %s299 = smul.u32 32, %s21
      %s300 = smul.u32 2, %s22
      %s301 = smul.u32 32, %s22
      %p302 = scmp.lt.s32.totalorder %s20, 1
      %s303 = scalar_select %p302, %s20, 1
      %p304 = scmp.lt.s32.totalorder %s301, 31
      %s305 = scalar_select %p304, %s301, 31
      %s306 = smul.addr %s303, 32
      %s307 = sadd.s32 %s305, %s306
      %s308 = smul.addr %s307, 4
      %s309 = scalar_lea.vmem %s1, %s308
      %s310 = smul.u32 32, %s22
      %p311 = scmp.lt.s32.totalorder %s20, 1
      %s312 = scalar_select %p311, %s20, 1
      %s313 = scalar_lea.vmem %s2, %s312
      %p314 = scmp.lt.s32.totalorder %s20, 1
      %s315 = scalar_select %p314, %s20, 1
      %s316 = scalar_lea.vmem %s3, %s315
      %s317 = smul.u32 32, %s21
      %p318 = scmp.lt.s32.totalorder %s20, 1
      %s319 = scalar_select %p318, %s20, 1
      %p320 = scmp.lt.s32.totalorder %s317, 63
      %s321 = scalar_select %p320, %s317, 63
      %s322 = smul.addr %s319, 64
      %s323 = sadd.s32 %s321, %s322
      %s324 = smul.addr %s323, 8
      %s325 = scalar_lea.vmem %s4, %s324
      %s326 = smul.u32 32, %s21
      %p328 = scmp.eq.s32.totalorder %s22, 0
      // Predicated region
      $region37: #{fused_matmul.1} parent=35 // pred_check
        %p329 = pneg %p328
      $region38: #{fused_matmul.1} parent=35 // pred_check_branch
        %331 = sbr.rel (%p329) target = $region40
      $region39: #{fused_matmul.1} parent=35 // pred_region
        %vm332 = vcmask 523264
        %333 = vst.msk [vmem:[#allocation2] sm:$0xff] %vm332, 0.0
        %334 = vst.msk [vmem:[#allocation2 + $0x8] sm:$0xff] %vm332, 0.0
        %335 = vst.msk [vmem:[#allocation2 + $0x10] sm:$0xff] %vm332, 0.0
        %336 = vst.msk [vmem:[#allocation2 + $0x18] sm:$0xff] %vm332, 0.0
        %337 = vst.msk [vmem:[#allocation2 + $0x20] sm:$0xff] %vm332, 0.0
        %338 = vst.msk [vmem:[#allocation2 + $0x28] sm:$0xff] %vm332, 0.0
        %339 = vst.msk [vmem:[#allocation2 + $0x30] sm:$0xff] %vm332, 0.0
        %340 = vst.msk [vmem:[#allocation2 + $0x38] sm:$0xff] %vm332, 0.0
        %341 = vst.msk [vmem:[#allocation2 + $0x40] sm:$0xff] %vm332, 0.0
        %342 = vst.msk [vmem:[#allocation2 + $0x48] sm:$0xff] %vm332, 0.0
        %343 = vst.msk [vmem:[#allocation2 + $0x50] sm:$0xff] %vm332, 0.0
        %344 = vst.msk [vmem:[#allocation2 + $0x58] sm:$0xff] %vm332, 0.0
        %345 = vst.msk [vmem:[#allocation2 + $0x60] sm:$0xff] %vm332, 0.0
        %346 = vst.msk [vmem:[#allocation2 + $0x68] sm:$0xff] %vm332, 0.0
        %347 = vst.msk [vmem:[#allocation2 + $0x70] sm:$0xff] %vm332, 0.0
        %348 = vst.msk [vmem:[#allocation2 + $0x78] sm:$0xff] %vm332, 0.0
        %349 = vst.msk [vmem:[#allocation2 + $0x80] sm:$0xff] %vm332, 0.0
        %350 = vst.msk [vmem:[#allocation2 + $0x88] sm:$0xff] %vm332, 0.0
        %351 = vst.msk [vmem:[#allocation2 + $0x90] sm:$0xff] %vm332, 0.0
        %352 = vst.msk [vmem:[#allocation2 + $0x98] sm:$0xff] %vm332, 0.0
        %353 = vst.msk [vmem:[#allocation2 + $0xa0] sm:$0xff] %vm332, 0.0
        %354 = vst.msk [vmem:[#allocation2 + $0xa8] sm:$0xff] %vm332, 0.0
        %355 = vst.msk [vmem:[#allocation2 + $0xb0] sm:$0xff] %vm332, 0.0
        %356 = vst.msk [vmem:[#allocation2 + $0xb8] sm:$0xff] %vm332, 0.0
        %357 = vst.msk [vmem:[#allocation2 + $0xc0] sm:$0xff] %vm332, 0.0
        %358 = vst.msk [vmem:[#allocation2 + $0xc8] sm:$0xff] %vm332, 0.0
        %359 = vst.msk [vmem:[#allocation2 + $0xd0] sm:$0xff] %vm332, 0.0
        %360 = vst.msk [vmem:[#allocation2 + $0xd8] sm:$0xff] %vm332, 0.0
        %361 = vst.msk [vmem:[#allocation2 + $0xe0] sm:$0xff] %vm332, 0.0
        %362 = vst.msk [vmem:[#allocation2 + $0xe8] sm:$0xff] %vm332, 0.0
        %363 = vst.msk [vmem:[#allocation2 + $0xf0] sm:$0xff] %vm332, 0.0
        %364 = vst.msk [vmem:[#allocation2 + $0xf8] sm:$0xff] %vm332, 0.0
      $region40: #{fused_matmul.1} parent=35 // pred_fallthru
        _
      %v365 = vld [vmem:[#allocation2] sm:$0xff]
      %v366 = vld [vmem:[#allocation2 + $0x8] sm:$0xff]
      %v367 = vld [vmem:[#allocation2 + $0x10] sm:$0xff]
      %v368 = vld [vmem:[#allocation2 + $0x18] sm:$0xff]
      %v369 = vld [vmem:[#allocation2 + $0x20] sm:$0xff]
      %v370 = vld [vmem:[#allocation2 + $0x28] sm:$0xff]
      %v371 = vld [vmem:[#allocation2 + $0x30] sm:$0xff]
      %v372 = vld [vmem:[#allocation2 + $0x38] sm:$0xff]
      %v373 = vld [vmem:[#allocation2 + $0x40] sm:$0xff]
      %v374 = vld [vmem:[#allocation2 + $0x48] sm:$0xff]
      %v375 = vld [vmem:[#allocation2 + $0x50] sm:$0xff]
      %v376 = vld [vmem:[#allocation2 + $0x58] sm:$0xff]
      %v377 = vld [vmem:[#allocation2 + $0x60] sm:$0xff]
      %v378 = vld [vmem:[#allocation2 + $0x68] sm:$0xff]
      %v379 = vld [vmem:[#allocation2 + $0x70] sm:$0xff]
      %v380 = vld [vmem:[#allocation2 + $0x78] sm:$0xff]
      %v381 = vld [vmem:[#allocation2 + $0x80] sm:$0xff]
      %v382 = vld [vmem:[#allocation2 + $0x88] sm:$0xff]
      %v383 = vld [vmem:[#allocation2 + $0x90] sm:$0xff]
      %v384 = vld [vmem:[#allocation2 + $0x98] sm:$0xff]
      %v385 = vld [vmem:[#allocation2 + $0xa0] sm:$0xff]
      %v386 = vld [vmem:[#allocation2 + $0xa8] sm:$0xff]
      %v387 = vld [vmem:[#allocation2 + $0xb0] sm:$0xff]
      %v388 = vld [vmem:[#allocation2 + $0xb8] sm:$0xff]
      %v389 = vld [vmem:[#allocation2 + $0xc0] sm:$0xff]
      %v390 = vld [vmem:[#allocation2 + $0xc8] sm:$0xff]
      %v391 = vld [vmem:[#allocation2 + $0xd0] sm:$0xff]
      %v392 = vld [vmem:[#allocation2 + $0xd8] sm:$0xff]
      %v393 = vld [vmem:[#allocation2 + $0xe0] sm:$0xff]
      %v394 = vld [vmem:[#allocation2 + $0xe8] sm:$0xff]
      %v395 = vld [vmem:[#allocation2 + $0xf0] sm:$0xff]
      %v396 = vld [vmem:[#allocation2 + $0xf8] sm:$0xff]
      %v397 = vld [vmem:[%s298] sm:$0xff]
      %v398 = vld [vmem:[%s298 + $0x8] sm:$0xff]
      %v399 = vld [vmem:[%s298 + $0x10] sm:$0xff]
      %v400 = vld [vmem:[%s298 + $0x18] sm:$0xff]
      %v401 = vld [vmem:[%s298 + $0x20] sm:$0xff]
      %v402 = vld [vmem:[%s298 + $0x28] sm:$0xff]
      %v403 = vld [vmem:[%s298 + $0x30] sm:$0xff]
      %v404 = vld [vmem:[%s298 + $0x38] sm:$0xff]
      %v405 = vld [vmem:[%s298 + $0x40] sm:$0xff]
      %v406 = vld [vmem:[%s298 + $0x48] sm:$0xff]
      %v407 = vld [vmem:[%s298 + $0x50] sm:$0xff]
      %v408 = vld [vmem:[%s298 + $0x58] sm:$0xff]
      %v409 = vld [vmem:[%s298 + $0x60] sm:$0xff]
      %v410 = vld [vmem:[%s298 + $0x68] sm:$0xff]
      %v411 = vld [vmem:[%s298 + $0x70] sm:$0xff]
      %v412 = vld [vmem:[%s298 + $0x78] sm:$0xff]
      %v413 = vld [vmem:[%s298 + $0x80] sm:$0xff]
      %v414 = vld [vmem:[%s298 + $0x88] sm:$0xff]
      %v415 = vld [vmem:[%s298 + $0x90] sm:$0xff]
      %v416 = vld [vmem:[%s298 + $0x98] sm:$0xff]
      %v417 = vld [vmem:[%s298 + $0xa0] sm:$0xff]
      %v418 = vld [vmem:[%s298 + $0xa8] sm:$0xff]
      %v419 = vld [vmem:[%s298 + $0xb0] sm:$0xff]
      %v420 = vld [vmem:[%s298 + $0xb8] sm:$0xff]
      %v421 = vld [vmem:[%s298 + $0xc0] sm:$0xff]
      %v422 = vld [vmem:[%s298 + $0xc8] sm:$0xff]
      %v423 = vld [vmem:[%s298 + $0xd0] sm:$0xff]
      %v424 = vld [vmem:[%s298 + $0xd8] sm:$0xff]
      %v425 = vld [vmem:[%s298 + $0xe0] sm:$0xff]
      %v426 = vld [vmem:[%s298 + $0xe8] sm:$0xff]
      %v427 = vld [vmem:[%s298 + $0xf0] sm:$0xff]
      %v428 = vld [vmem:[%s298 + $0xf8] sm:$0xff]
      %v429 = vld [vmem:[%s309] sm:$0xf]
      %v430 = vld [vmem:[%s309 + $0x4] sm:$0xf]
      %v431 = vld [vmem:[%s309 + $0x8] sm:$0xf]
      %v432 = vld [vmem:[%s309 + $0xc] sm:$0xf]
      %v433 = vld [vmem:[%s309 + $0x10] sm:$0xf]
      %v434 = vld [vmem:[%s309 + $0x14] sm:$0xf]
      %v435 = vld [vmem:[%s309 + $0x18] sm:$0xf]
      %v436 = vld [vmem:[%s309 + $0x1c] sm:$0xf]
      %v437 = vld [vmem:[%s309 + $0x20] sm:$0xf]
      %v438 = vld [vmem:[%s309 + $0x24] sm:$0xf]
      %v439 = vld [vmem:[%s309 + $0x28] sm:$0xf]
      %v440 = vld [vmem:[%s309 + $0x2c] sm:$0xf]
      %v441 = vld [vmem:[%s309 + $0x30] sm:$0xf]
      %v442 = vld [vmem:[%s309 + $0x34] sm:$0xf]
      %v443 = vld [vmem:[%s309 + $0x38] sm:$0xf]
      %v444 = vld [vmem:[%s309 + $0x3c] sm:$0xf]
      %v445 = vld [vmem:[%s309 + $0x40] sm:$0xf]
      %v446 = vld [vmem:[%s309 + $0x44] sm:$0xf]
      %v447 = vld [vmem:[%s309 + $0x48] sm:$0xf]
      %v448 = vld [vmem:[%s309 + $0x4c] sm:$0xf]
      %v449 = vld [vmem:[%s309 + $0x50] sm:$0xf]
      %v450 = vld [vmem:[%s309 + $0x54] sm:$0xf]
      %v451 = vld [vmem:[%s309 + $0x58] sm:$0xf]
      %v452 = vld [vmem:[%s309 + $0x5c] sm:$0xf]
      %v453 = vld [vmem:[%s309 + $0x60] sm:$0xf]
      %v454 = vld [vmem:[%s309 + $0x64] sm:$0xf]
      %v455 = vld [vmem:[%s309 + $0x68] sm:$0xf]
      %v456 = vld [vmem:[%s309 + $0x6c] sm:$0xf]
      %v457 = vld [vmem:[%s309 + $0x70] sm:$0xf]
      %v458 = vld [vmem:[%s309 + $0x74] sm:$0xf]
      %v459 = vld [vmem:[%s309 + $0x78] sm:$0xf]
      %v460 = vld [vmem:[%s309 + $0x7c] sm:$0xf]
      %v493 = vunpack.c.l.b16 %v397
      %v494 = vunpack.c.h.b16 %v397
      %v495 = vunpack.c.l.b16 %v398
      %v496 = vunpack.c.h.b16 %v398
      %v497 = vunpack.c.l.b16 %v399
      %v498 = vunpack.c.h.b16 %v399
      %v499 = vunpack.c.l.b16 %v400
      %v500 = vunpack.c.h.b16 %v400
      %v501 = vunpack.c.l.b16 %v401
      %v502 = vunpack.c.h.b16 %v401
      %v503 = vunpack.c.l.b16 %v402
      %v504 = vunpack.c.h.b16 %v402
      %v505 = vunpack.c.l.b16 %v403
      %v506 = vunpack.c.h.b16 %v403
      %v507 = vunpack.c.l.b16 %v404
      %v508 = vunpack.c.h.b16 %v404
      %v509 = vunpack.c.l.b16 %v405
      %v510 = vunpack.c.h.b16 %v405
      %v511 = vunpack.c.l.b16 %v406
      %v512 = vunpack.c.h.b16 %v406
      %v513 = vunpack.c.l.b16 %v407
      %v514 = vunpack.c.h.b16 %v407
      %v515 = vunpack.c.l.b16 %v408
      %v516 = vunpack.c.h.b16 %v408
      %v517 = vunpack.c.l.b16 %v409
      %v518 = vunpack.c.h.b16 %v409
      %v519 = vunpack.c.l.b16 %v410
      %v520 = vunpack.c.h.b16 %v410
      %v521 = vunpack.c.l.b16 %v411
      %v522 = vunpack.c.h.b16 %v411
      %v523 = vunpack.c.l.b16 %v412
      %v524 = vunpack.c.h.b16 %v412
      %v525 = vunpack.c.l.b16 %v413
      %v526 = vunpack.c.h.b16 %v413
      %v527 = vunpack.c.l.b16 %v414
      %v528 = vunpack.c.h.b16 %v414
      %v529 = vunpack.c.l.b16 %v415
      %v530 = vunpack.c.h.b16 %v415
      %v531 = vunpack.c.l.b16 %v416
      %v532 = vunpack.c.h.b16 %v416
      %v533 = vunpack.c.l.b16 %v417
      %v534 = vunpack.c.h.b16 %v417
      %v535 = vunpack.c.l.b16 %v418
      %v536 = vunpack.c.h.b16 %v418
      %v537 = vunpack.c.l.b16 %v419
      %v538 = vunpack.c.h.b16 %v419
      %v539 = vunpack.c.l.b16 %v420
      %v540 = vunpack.c.h.b16 %v420
      %v541 = vunpack.c.l.b16 %v421
      %v542 = vunpack.c.h.b16 %v421
      %v543 = vunpack.c.l.b16 %v422
      %v544 = vunpack.c.h.b16 %v422
      %v545 = vunpack.c.l.b16 %v423
      %v546 = vunpack.c.h.b16 %v423
      %v547 = vunpack.c.l.b16 %v424
      %v548 = vunpack.c.h.b16 %v424
      %v549 = vunpack.c.l.b16 %v425
      %v550 = vunpack.c.h.b16 %v425
      %v551 = vunpack.c.l.b16 %v426
      %v552 = vunpack.c.h.b16 %v426
      %v553 = vunpack.c.l.b16 %v427
      %v554 = vunpack.c.h.b16 %v427
      %v555 = vunpack.c.l.b16 %v428
      %v556 = vunpack.c.h.b16 %v428
      %v557 = vpack.c.b16 %v495, %v493
      %v558 = vpack.c.b16 %v496, %v494
      %v559 = vpack.c.b16 %v499, %v497
      %v560 = vpack.c.b16 %v500, %v498
      %v561 = vpack.c.b16 %v503, %v501
      %v562 = vpack.c.b16 %v504, %v502
      %v563 = vpack.c.b16 %v507, %v505
      %v564 = vpack.c.b16 %v508, %v506
      %v565 = vpack.c.b16 %v511, %v509
      %v566 = vpack.c.b16 %v512, %v510
      %v567 = vpack.c.b16 %v515, %v513
      %v568 = vpack.c.b16 %v516, %v514
      %v569 = vpack.c.b16 %v519, %v517
      %v570 = vpack.c.b16 %v520, %v518
      %v571 = vpack.c.b16 %v523, %v521
      %v572 = vpack.c.b16 %v524, %v522
      %v573 = vpack.c.b16 %v527, %v525
      %v574 = vpack.c.b16 %v528, %v526
      %v575 = vpack.c.b16 %v531, %v529
      %v576 = vpack.c.b16 %v532, %v530
      %v577 = vpack.c.b16 %v535, %v533
      %v578 = vpack.c.b16 %v536, %v534
      %v579 = vpack.c.b16 %v539, %v537
      %v580 = vpack.c.b16 %v540, %v538
      %v581 = vpack.c.b16 %v543, %v541
      %v582 = vpack.c.b16 %v544, %v542
      %v583 = vpack.c.b16 %v547, %v545
      %v584 = vpack.c.b16 %v548, %v546
      %v585 = vpack.c.b16 %v551, %v549
      %v586 = vpack.c.b16 %v552, %v550
      %v587 = vpack.c.b16 %v555, %v553
      %v588 = vpack.c.b16 %v556, %v554
      %v653 = vunpack.c.l.b16 %v429
      %v654 = vunpack.c.l.b16 %v430
      %v655 = vunpack.c.l.b16 %v431
      %v656 = vunpack.c.l.b16 %v432
      %v657 = vunpack.c.l.b16 %v433
      %v658 = vunpack.c.l.b16 %v434
      %v659 = vunpack.c.l.b16 %v435
      %v660 = vunpack.c.l.b16 %v436
      %v661 = vunpack.c.l.b16 %v437
      %v662 = vunpack.c.l.b16 %v438
      %v663 = vunpack.c.l.b16 %v439
      %v664 = vunpack.c.l.b16 %v440
      %v665 = vunpack.c.l.b16 %v441
      %v666 = vunpack.c.l.b16 %v442
      %v667 = vunpack.c.l.b16 %v443
      %v668 = vunpack.c.l.b16 %v444
      %v669 = vunpack.c.l.b16 %v445
      %v670 = vunpack.c.l.b16 %v446
      %v671 = vunpack.c.l.b16 %v447
      %v672 = vunpack.c.l.b16 %v448
      %v673 = vunpack.c.l.b16 %v449
      %v674 = vunpack.c.l.b16 %v450
      %v675 = vunpack.c.l.b16 %v451
      %v676 = vunpack.c.l.b16 %v452
      %v677 = vunpack.c.l.b16 %v453
      %v678 = vunpack.c.l.b16 %v454
      %v679 = vunpack.c.l.b16 %v455
      %v680 = vunpack.c.l.b16 %v456
      %v681 = vunpack.c.l.b16 %v457
      %v682 = vunpack.c.l.b16 %v458
      %v683 = vunpack.c.l.b16 %v459
      %v684 = vunpack.c.l.b16 %v460
      %v685 = vpack.c.b16 %v654, %v653
      %v686 = vpack.c.b16 %v656, %v655
      %v687 = vpack.c.b16 %v658, %v657
      %v688 = vpack.c.b16 %v660, %v659
      %v689 = vpack.c.b16 %v662, %v661
      %v690 = vpack.c.b16 %v664, %v663
      %v691 = vpack.c.b16 %v666, %v665
      %v692 = vpack.c.b16 %v668, %v667
      %v693 = vpack.c.b16 %v670, %v669
      %v694 = vpack.c.b16 %v672, %v671
      %v695 = vpack.c.b16 %v674, %v673
      %v696 = vpack.c.b16 %v676, %v675
      %v697 = vpack.c.b16 %v678, %v677
      %v698 = vpack.c.b16 %v680, %v679
      %v699 = vpack.c.b16 %v682, %v681
      %v700 = vpack.c.b16 %v684, %v683
      %717 = vmatprep.subr.bf16.mxu0 0
      %718 = vmatpush1.bf16.msra.mxu0 %v685
      %719 = vmatprep.subr.bf16.mxu0 0
      %720 = vmatpush1.bf16.msra.mxu0 %v686
      %721 = vmatprep.subr.bf16.mxu0 0
      %722 = vmatpush1.bf16.msra.mxu0 %v687
      %723 = vmatprep.subr.bf16.mxu0 0
      %724 = vmatpush1.bf16.msra.mxu0 %v688
      %725 = vmatprep.subr.bf16.mxu0 0
      %726 = vmatpush1.bf16.msra.mxu0 %v689
      %727 = vmatprep.subr.bf16.mxu0 0
      %728 = vmatpush1.bf16.msra.mxu0 %v690
      %729 = vmatprep.subr.bf16.mxu0 0
      %730 = vmatpush1.bf16.msra.mxu0 %v691
      %731 = vmatprep.subr.bf16.mxu0 0
      %732 = vmatpush1.bf16.msra.mxu0 %v692
      %733 = vmatprep.subr.bf16.mxu0 0
      %734 = vmatpush1.bf16.msra.mxu0 %v693
      %735 = vmatprep.subr.bf16.mxu0 0
      %736 = vmatpush1.bf16.msra.mxu0 %v694
      %737 = vmatprep.subr.bf16.mxu0 0
      %738 = vmatpush1.bf16.msra.mxu0 %v695
      %739 = vmatprep.subr.bf16.mxu0 0
      %740 = vmatpush1.bf16.msra.mxu0 %v696
      %741 = vmatprep.subr.bf16.mxu0 0
      %742 = vmatpush1.bf16.msra.mxu0 %v697
      %743 = vmatprep.subr.bf16.mxu0 0
      %744 = vmatpush1.bf16.msra.mxu0 %v698
      %745 = vmatprep.subr.bf16.mxu0 0
      %746 = vmatpush1.bf16.msra.mxu0 %v699
      %747 = vmatprep.subr.bf16.mxu0 0
      %748 = vmatpush1.bf16.msra.mxu0 %v700
      %749 = vmatprep.mubr.bf16.mxu0 %v558
      %750 = vmatmul.mubr.bf16.gmra.mrb[0].mxu0 %v557
      %v751 = vpop.f32.mrb[0].mxu0
      %v752 = vadd.f32 0.0, %v751
      %v753 = vpop.f32.mrb[0].mxu0
      %v754 = vpop.f32.mrb[0].mxu0
      %v755 = vadd.f32 0.0, %v754
      %v756 = vpop.f32.mrb[0].mxu0
      %757 = vmatprep.mubr.bf16.mxu0 %v560
      %758 = vmatmul.mubr.bf16.gmra.mrb[0].mxu0 %v559
      %v759 = vpop.f32.mrb[0].mxu0
      %v760 = vadd.f32 0.0, %v759
      %v761 = vpop.f32.mrb[0].mxu0
      %v762 = vpop.f32.mrb[0].mxu0
      %v763 = vadd.f32 0.0, %v762
      %v764 = vpop.f32.mrb[0].mxu0
      %765 = vmatprep.mubr.bf16.mxu0 %v562
      %766 = vmatmul.mubr.bf16.gmra.mrb[0].mxu0 %v561
      %v767 = vpop.f32.mrb[0].mxu0
      %v768 = vadd.f32 0.0, %v767
      %v769 = vpop.f32.mrb[0].mxu0
      %v770 = vpop.f32.mrb[0].mxu0
      %v771 = vadd.f32 0.0, %v770
      %v772 = vpop.f32.mrb[0].mxu0
      %773 = vmatprep.mubr.bf16.mxu0 %v564
      %774 = vmatmul.mubr.bf16.gmra.mrb[0].mxu0 %v563
      %v775 = vpop.f32.mrb[0].mxu0
      %v776 = vadd.f32 0.0, %v775
      %v777 = vpop.f32.mrb[0].mxu0
      %v778 = vpop.f32.mrb[0].mxu0
      %v779 = vadd.f32 0.0, %v778
      %v780 = vpop.f32.mrb[0].mxu0
      %781 = vmatprep.mubr.bf16.mxu0 %v566
      %782 = vmatmul.mubr.bf16.gmra.mrb[0].mxu0 %v565
      %v783 = vpop.f32.mrb[0].mxu0
      %v784 = vadd.f32 0.0, %v783
      %v785 = vpop.f32.mrb[0].mxu0
      %v786 = vpop.f32.mrb[0].mxu0
      %v787 = vadd.f32 0.0, %v786
      %v788 = vpop.f32.mrb[0].mxu0
      %789 = vmatprep.mubr.bf16.mxu0 %v568
      %790 = vmatmul.mubr.bf16.gmra.mrb[0].mxu0 %v567
      %v791 = vpop.f32.mrb[0].mxu0
      %v792 = vadd.f32 0.0, %v791
      %v793 = vpop.f32.mrb[0].mxu0
      %v794 = vpop.f32.mrb[0].mxu0
      %v795 = vadd.f32 0.0, %v794
      %v796 = vpop.f32.mrb[0].mxu0
      %797 = vmatprep.mubr.bf16.mxu0 %v570
      %798 = vmatmul.mubr.bf16.gmra.mrb[0].mxu0 %v569
      %v799 = vpop.f32.mrb[0].mxu0
      %v800 = vadd.f32 0.0, %v799
      %v801 = vpop.f32.mrb[0].mxu0
      %v802 = vpop.f32.mrb[0].mxu0
      %v803 = vadd.f32 0.0, %v802
      %v804 = vpop.f32.mrb[0].mxu0
      %805 = vmatprep.mubr.bf16.mxu0 %v572
      %806 = vmatmul.mubr.bf16.gmra.mrb[0].mxu0 %v571
      %v807 = vpop.f32.mrb[0].mxu0
      %v808 = vadd.f32 0.0, %v807
      %v809 = vpop.f32.mrb[0].mxu0
      %v810 = vpop.f32.mrb[0].mxu0
      %v811 = vadd.f32 0.0, %v810
      %v812 = vpop.f32.mrb[0].mxu0
      %813 = vmatprep.mubr.bf16.mxu0 %v574
      %814 = vmatmul.mubr.bf16.gmra.mrb[0].mxu0 %v573
      %v815 = vpop.f32.mrb[0].mxu0
      %v816 = vadd.f32 0.0, %v815
      %v817 = vpop.f32.mrb[0].mxu0
      %v818 = vpop.f32.mrb[0].mxu0
      %v819 = vadd.f32 0.0, %v818
      %v820 = vpop.f32.mrb[0].mxu0
      %821 = vmatprep.mubr.bf16.mxu0 %v576
      %822 = vmatmul.mubr.bf16.gmra.mrb[0].mxu0 %v575
      %v823 = vpop.f32.mrb[0].mxu0
      %v824 = vadd.f32 0.0, %v823
      %v825 = vpop.f32.mrb[0].mxu0
      %v826 = vpop.f32.mrb[0].mxu0
      %v827 = vadd.f32 0.0, %v826
      %v828 = vpop.f32.mrb[0].mxu0
      %829 = vmatprep.mubr.bf16.mxu0 %v578
      %830 = vmatmul.mubr.bf16.gmra.mrb[0].mxu0 %v577
      %v831 = vpop.f32.mrb[0].mxu0
      %v832 = vadd.f32 0.0, %v831
      %v833 = vpop.f32.mrb[0].mxu0
      %v834 = vpop.f32.mrb[0].mxu0
      %v835 = vadd.f32 0.0, %v834
      %v836 = vpop.f32.mrb[0].mxu0
      %837 = vmatprep.mubr.bf16.mxu0 %v580
      %838 = vmatmul.mubr.bf16.gmra.mrb[0].mxu0 %v579
      %v839 = vpop.f32.mrb[0].mxu0
      %v840 = vadd.f32 0.0, %v839
      %v841 = vpop.f32.mrb[0].mxu0
      %v842 = vpop.f32.mrb[0].mxu0
      %v843 = vadd.f32 0.0, %v842
      %v844 = vpop.f32.mrb[0].mxu0
      %845 = vmatprep.mubr.bf16.mxu0 %v582
      %846 = vmatmul.mubr.bf16.gmra.mrb[0].mxu0 %v581
      %v847 = vpop.f32.mrb[0].mxu0
      %v848 = vadd.f32 0.0, %v847
      %v849 = vpop.f32.mrb[0].mxu0
      %v850 = vpop.f32.mrb[0].mxu0
      %v851 = vadd.f32 0.0, %v850
      %v852 = vpop.f32.mrb[0].mxu0
      %853 = vmatprep.mubr.bf16.mxu0 %v584
      %854 = vmatmul.mubr.bf16.gmra.mrb[0].mxu0 %v583
      %v855 = vpop.f32.mrb[0].mxu0
      %v856 = vadd.f32 0.0, %v855
      %v857 = vpop.f32.mrb[0].mxu0
      %v858 = vpop.f32.mrb[0].mxu0
      %v859 = vadd.f32 0.0, %v858
      %v860 = vpop.f32.mrb[0].mxu0
      %861 = vmatprep.mubr.bf16.mxu0 %v586
      %862 = vmatmul.mubr.bf16.gmra.mrb[0].mxu0 %v585
      %v863 = vpop.f32.mrb[0].mxu0
      %v864 = vadd.f32 0.0, %v863
      %v865 = vpop.f32.mrb[0].mxu0
      %v866 = vpop.f32.mrb[0].mxu0
      %v867 = vadd.f32 0.0, %v866
      %v868 = vpop.f32.mrb[0].mxu0
      %869 = vmatprep.mubr.bf16.mxu0 %v588
      %870 = vmatmul.mubr.bf16.gmra.mrb[0].mxu0 %v587
      %v871 = vpop.f32.mrb[0].mxu0
      %v872 = vadd.f32 0.0, %v871
      %v873 = vpop.f32.mrb[0].mxu0
      %v874 = vpop.f32.mrb[0].mxu0
      %v875 = vadd.f32 0.0, %v874
      %v876 = vpop.f32.mrb[0].mxu0
      %877 = vdwg.mxu0
      %v878 = vadd.f32 %v365, %v752
      %v879 = vadd.f32 %v366, %v755
      %v880 = vadd.f32 %v367, %v760
      %v881 = vadd.f32 %v368, %v763
      %v882 = vadd.f32 %v369, %v768
      %v883 = vadd.f32 %v370, %v771
      %v884 = vadd.f32 %v371, %v776
      %v885 = vadd.f32 %v372, %v779
      %v886 = vadd.f32 %v373, %v784
      %v887 = vadd.f32 %v374, %v787
      %v888 = vadd.f32 %v375, %v792
      %v889 = vadd.f32 %v376, %v795
      %v890 = vadd.f32 %v377, %v800
      %v891 = vadd.f32 %v378, %v803
      %v892 = vadd.f32 %v379, %v808
      %v893 = vadd.f32 %v380, %v811
      %v894 = vadd.f32 %v381, %v816
      %v895 = vadd.f32 %v382, %v819
      %v896 = vadd.f32 %v383, %v824
      %v897 = vadd.f32 %v384, %v827
      %v898 = vadd.f32 %v385, %v832
      %v899 = vadd.f32 %v386, %v835
      %v900 = vadd.f32 %v387, %v840
      %v901 = vadd.f32 %v388, %v843
      %v902 = vadd.f32 %v389, %v848
      %v903 = vadd.f32 %v390, %v851
      %v904 = vadd.f32 %v391, %v856
      %v905 = vadd.f32 %v392, %v859
      %v906 = vadd.f32 %v393, %v864
      %v907 = vadd.f32 %v394, %v867
      %v908 = vadd.f32 %v395, %v872
      %v909 = vadd.f32 %v396, %v875
      %vm910 = vcmask 523264
      %911 = vst.msk [vmem:[#allocation2] sm:$0xff] %vm910, %v878
      %912 = vst.msk [vmem:[#allocation2 + $0x8] sm:$0xff] %vm910, %v879
      %913 = vst.msk [vmem:[#allocation2 + $0x10] sm:$0xff] %vm910, %v880
      %914 = vst.msk [vmem:[#allocation2 + $0x18] sm:$0xff] %vm910, %v881
      %915 = vst.msk [vmem:[#allocation2 + $0x20] sm:$0xff] %vm910, %v882
      %916 = vst.msk [vmem:[#allocation2 + $0x28] sm:$0xff] %vm910, %v883
      %917 = vst.msk [vmem:[#allocation2 + $0x30] sm:$0xff] %vm910, %v884
      %918 = vst.msk [vmem:[#allocation2 + $0x38] sm:$0xff] %vm910, %v885
      %919 = vst.msk [vmem:[#allocation2 + $0x40] sm:$0xff] %vm910, %v886
      %920 = vst.msk [vmem:[#allocation2 + $0x48] sm:$0xff] %vm910, %v887
      %921 = vst.msk [vmem:[#allocation2 + $0x50] sm:$0xff] %vm910, %v888
      %922 = vst.msk [vmem:[#allocation2 + $0x58] sm:$0xff] %vm910, %v889
      %923 = vst.msk [vmem:[#allocation2 + $0x60] sm:$0xff] %vm910, %v890
      %924 = vst.msk [vmem:[#allocation2 + $0x68] sm:$0xff] %vm910, %v891
      %925 = vst.msk [vmem:[#allocation2 + $0x70] sm:$0xff] %vm910, %v892
      %926 = vst.msk [vmem:[#allocation2 + $0x78] sm:$0xff] %vm910, %v893
      %927 = vst.msk [vmem:[#allocation2 + $0x80] sm:$0xff] %vm910, %v894
      %928 = vst.msk [vmem:[#allocation2 + $0x88] sm:$0xff] %vm910, %v895
      %929 = vst.msk [vmem:[#allocation2 + $0x90] sm:$0xff] %vm910, %v896
      %930 = vst.msk [vmem:[#allocation2 + $0x98] sm:$0xff] %vm910, %v897
      %931 = vst.msk [vmem:[#allocation2 + $0xa0] sm:$0xff] %vm910, %v898
      %932 = vst.msk [vmem:[#allocation2 + $0xa8] sm:$0xff] %vm910, %v899
      %933 = vst.msk [vmem:[#allocation2 + $0xb0] sm:$0xff] %vm910, %v900
      %934 = vst.msk [vmem:[#allocation2 + $0xb8] sm:$0xff] %vm910, %v901
      %935 = vst.msk [vmem:[#allocation2 + $0xc0] sm:$0xff] %vm910, %v902
      %936 = vst.msk [vmem:[#allocation2 + $0xc8] sm:$0xff] %vm910, %v903
      %937 = vst.msk [vmem:[#allocation2 + $0xd0] sm:$0xff] %vm910, %v904
      %938 = vst.msk [vmem:[#allocation2 + $0xd8] sm:$0xff] %vm910, %v905
      %939 = vst.msk [vmem:[#allocation2 + $0xe0] sm:$0xff] %vm910, %v906
      %940 = vst.msk [vmem:[#allocation2 + $0xe8] sm:$0xff] %vm910, %v907
      %941 = vst.msk [vmem:[#allocation2 + $0xf0] sm:$0xff] %vm910, %v908
      %942 = vst.msk [vmem:[#allocation2 + $0xf8] sm:$0xff] %vm910, %v909
      // Predicated region
      $region41: #{fused_matmul.1} parent=35 // pred_check
        %p943 = pneg %p328
      $region42: #{fused_matmul.1} parent=35 // pred_check_branch
        %945 = sbr.rel (%p943) target = $region44
      $region43: #{fused_matmul.1} parent=35 // pred_region
        %v946 = vld [vmem:[#allocation2] sm:$0xff]
        %v947 = vld [vmem:[#allocation2 + $0x8] sm:$0xff]
        %v948 = vld [vmem:[#allocation2 + $0x10] sm:$0xff]
        %v949 = vld [vmem:[#allocation2 + $0x18] sm:$0xff]
        %v950 = vld [vmem:[#allocation2 + $0x20] sm:$0xff]
        %v951 = vld [vmem:[#allocation2 + $0x28] sm:$0xff]
        %v952 = vld [vmem:[#allocation2 + $0x30] sm:$0xff]
        %v953 = vld [vmem:[#allocation2 + $0x38] sm:$0xff]
        %v954 = vld [vmem:[#allocation2 + $0x40] sm:$0xff]
        %v955 = vld [vmem:[#allocation2 + $0x48] sm:$0xff]
        %v956 = vld [vmem:[#allocation2 + $0x50] sm:$0xff]
        %v957 = vld [vmem:[#allocation2 + $0x58] sm:$0xff]
        %v958 = vld [vmem:[#allocation2 + $0x60] sm:$0xff]
        %v959 = vld [vmem:[#allocation2 + $0x68] sm:$0xff]
        %v960 = vld [vmem:[#allocation2 + $0x70] sm:$0xff]
        %v961 = vld [vmem:[#allocation2 + $0x78] sm:$0xff]
        %v962 = vld [vmem:[#allocation2 + $0x80] sm:$0xff]
        %v963 = vld [vmem:[#allocation2 + $0x88] sm:$0xff]
        %v964 = vld [vmem:[#allocation2 + $0x90] sm:$0xff]
        %v965 = vld [vmem:[#allocation2 + $0x98] sm:$0xff]
        %v966 = vld [vmem:[#allocation2 + $0xa0] sm:$0xff]
        %v967 = vld [vmem:[#allocation2 + $0xa8] sm:$0xff]
        %v968 = vld [vmem:[#allocation2 + $0xb0] sm:$0xff]
        %v969 = vld [vmem:[#allocation2 + $0xb8] sm:$0xff]
        %v970 = vld [vmem:[#allocation2 + $0xc0] sm:$0xff]
        %v971 = vld [vmem:[#allocation2 + $0xc8] sm:$0xff]
        %v972 = vld [vmem:[#allocation2 + $0xd0] sm:$0xff]
        %v973 = vld [vmem:[#allocation2 + $0xd8] sm:$0xff]
        %v974 = vld [vmem:[#allocation2 + $0xe0] sm:$0xff]
        %v975 = vld [vmem:[#allocation2 + $0xe8] sm:$0xff]
        %v976 = vld [vmem:[#allocation2 + $0xf0] sm:$0xff]
        %v977 = vld [vmem:[#allocation2 + $0xf8] sm:$0xff]
        %v978 = vld [vmem:[%s313] sm:$0x1]
        %v980 = vlaneseq
        %v981 = vshrl.u32 %v980, 7
        %v982 = vsub.s32 0, %v981
        %v983 = vrot.slane %v978, %v982
        %v985 = vmul.f32 %v946, %v983
        %v986 = vmul.f32 %v947, %v983
        %v987 = vmul.f32 %v948, %v983
        %v988 = vmul.f32 %v949, %v983
        %v989 = vmul.f32 %v950, %v983
        %v990 = vmul.f32 %v951, %v983
        %v991 = vmul.f32 %v952, %v983
        %v992 = vmul.f32 %v953, %v983
        %v993 = vmul.f32 %v954, %v983
        %v994 = vmul.f32 %v955, %v983
        %v995 = vmul.f32 %v956, %v983
        %v996 = vmul.f32 %v957, %v983
        %v997 = vmul.f32 %v958, %v983
        %v998 = vmul.f32 %v959, %v983
        %v999 = vmul.f32 %v960, %v983
        %v1000 = vmul.f32 %v961, %v983
        %v1001 = vmul.f32 %v962, %v983
        %v1002 = vmul.f32 %v963, %v983
        %v1003 = vmul.f32 %v964, %v983
        %v1004 = vmul.f32 %v965, %v983
        %v1005 = vmul.f32 %v966, %v983
        %v1006 = vmul.f32 %v967, %v983
        %v1007 = vmul.f32 %v968, %v983
        %v1008 = vmul.f32 %v969, %v983
        %v1009 = vmul.f32 %v970, %v983
        %v1010 = vmul.f32 %v971, %v983
        %v1011 = vmul.f32 %v972, %v983
        %v1012 = vmul.f32 %v973, %v983
        %v1013 = vmul.f32 %v974, %v983
        %v1014 = vmul.f32 %v975, %v983
        %v1015 = vmul.f32 %v976, %v983
        %v1016 = vmul.f32 %v977, %v983
        %v1017 = vld [vmem:[%s316] sm:$0x1]
        %v1019 = vlaneseq
        %v1020 = vshrl.u32 %v1019, 7
        %v1021 = vsub.s32 0, %v1020
        %v1022 = vrot.slane %v1017, %v1021
        %v1024 = vadd.f32 %v985, %v1022
        %v1025 = vadd.f32 %v986, %v1022
        %v1026 = vadd.f32 %v987, %v1022
        %v1027 = vadd.f32 %v988, %v1022
        %v1028 = vadd.f32 %v989, %v1022
        %v1029 = vadd.f32 %v990, %v1022
        %v1030 = vadd.f32 %v991, %v1022
        %v1031 = vadd.f32 %v992, %v1022
        %v1032 = vadd.f32 %v993, %v1022
        %v1033 = vadd.f32 %v994, %v1022
        %v1034 = vadd.f32 %v995, %v1022
        %v1035 = vadd.f32 %v996, %v1022
        %v1036 = vadd.f32 %v997, %v1022
        %v1037 = vadd.f32 %v998, %v1022
        %v1038 = vadd.f32 %v999, %v1022
        %v1039 = vadd.f32 %v1000, %v1022
        %v1040 = vadd.f32 %v1001, %v1022
        %v1041 = vadd.f32 %v1002, %v1022
        %v1042 = vadd.f32 %v1003, %v1022
        %v1043 = vadd.f32 %v1004, %v1022
        %v1044 = vadd.f32 %v1005, %v1022
        %v1045 = vadd.f32 %v1006, %v1022
        %v1046 = vadd.f32 %v1007, %v1022
        %v1047 = vadd.f32 %v1008, %v1022
        %v1048 = vadd.f32 %v1009, %v1022
        %v1049 = vadd.f32 %v1010, %v1022
        %v1050 = vadd.f32 %v1011, %v1022
        %v1051 = vadd.f32 %v1012, %v1022
        %v1052 = vadd.f32 %v1013, %v1022
        %v1053 = vadd.f32 %v1014, %v1022
        %v1054 = vadd.f32 %v1015, %v1022
        %v1055 = vadd.f32 %v1016, %v1022
        %v1056 = vmax.f32 %v1024, 0.0
        %v1057 = vmax.f32 %v1025, 0.0
        %v1058 = vmax.f32 %v1026, 0.0
        %v1059 = vmax.f32 %v1027, 0.0
        %v1060 = vmax.f32 %v1028, 0.0
        %v1061 = vmax.f32 %v1029, 0.0
        %v1062 = vmax.f32 %v1030, 0.0
        %v1063 = vmax.f32 %v1031, 0.0
        %v1064 = vmax.f32 %v1032, 0.0
        %v1065 = vmax.f32 %v1033, 0.0
        %v1066 = vmax.f32 %v1034, 0.0
        %v1067 = vmax.f32 %v1035, 0.0
        %v1068 = vmax.f32 %v1036, 0.0
        %v1069 = vmax.f32 %v1037, 0.0
        %v1070 = vmax.f32 %v1038, 0.0
        %v1071 = vmax.f32 %v1039, 0.0
        %v1072 = vmax.f32 %v1040, 0.0
        %v1073 = vmax.f32 %v1041, 0.0
        %v1074 = vmax.f32 %v1042, 0.0
        %v1075 = vmax.f32 %v1043, 0.0
        %v1076 = vmax.f32 %v1044, 0.0
        %v1077 = vmax.f32 %v1045, 0.0
        %v1078 = vmax.f32 %v1046, 0.0
        %v1079 = vmax.f32 %v1047, 0.0
        %v1080 = vmax.f32 %v1048, 0.0
        %v1081 = vmax.f32 %v1049, 0.0
        %v1082 = vmax.f32 %v1050, 0.0
        %v1083 = vmax.f32 %v1051, 0.0
        %v1084 = vmax.f32 %v1052, 0.0
        %v1085 = vmax.f32 %v1053, 0.0
        %v1086 = vmax.f32 %v1054, 0.0
        %v1087 = vmax.f32 %v1055, 0.0
        %1088 = vst.msk [vmem:[%s325] sm:$0xff] %vm910, %v1056
        %1089 = vst.msk [vmem:[%s325 + $0x8] sm:$0xff] %vm910, %v1057
        %1090 = vst.msk [vmem:[%s325 + $0x10] sm:$0xff] %vm910, %v1058
        %1091 = vst.msk [vmem:[%s325 + $0x18] sm:$0xff] %vm910, %v1059
        %1092 = vst.msk [vmem:[%s325 + $0x20] sm:$0xff] %vm910, %v1060
        %1093 = vst.msk [vmem:[%s325 + $0x28] sm:$0xff] %vm910, %v1061
        %1094 = vst.msk [vmem:[%s325 + $0x30] sm:$0xff] %vm910, %v1062
        %1095 = vst.msk [vmem:[%s325 + $0x38] sm:$0xff] %vm910, %v1063
        %1096 = vst.msk [vmem:[%s325 + $0x40] sm:$0xff] %vm910, %v1064
        %1097 = vst.msk [vmem:[%s325 + $0x48] sm:$0xff] %vm910, %v1065
        %1098 = vst.msk [vmem:[%s325 + $0x50] sm:$0xff] %vm910, %v1066
        %1099 = vst.msk [vmem:[%s325 + $0x58] sm:$0xff] %vm910, %v1067
        %1100 = vst.msk [vmem:[%s325 + $0x60] sm:$0xff] %vm910, %v1068
        %1101 = vst.msk [vmem:[%s325 + $0x68] sm:$0xff] %vm910, %v1069
        %1102 = vst.msk [vmem:[%s325 + $0x70] sm:$0xff] %vm910, %v1070
        %1103 = vst.msk [vmem:[%s325 + $0x78] sm:$0xff] %vm910, %v1071
        %1104 = vst.msk [vmem:[%s325 + $0x80] sm:$0xff] %vm910, %v1072
        %1105 = vst.msk [vmem:[%s325 + $0x88] sm:$0xff] %vm910, %v1073
        %1106 = vst.msk [vmem:[%s325 + $0x90] sm:$0xff] %vm910, %v1074
        %1107 = vst.msk [vmem:[%s325 + $0x98] sm:$0xff] %vm910, %v1075
        %1108 = vst.msk [vmem:[%s325 + $0xa0] sm:$0xff] %vm910, %v1076
        %1109 = vst.msk [vmem:[%s325 + $0xa8] sm:$0xff] %vm910, %v1077
        %1110 = vst.msk [vmem:[%s325 + $0xb0] sm:$0xff] %vm910, %v1078
        %1111 = vst.msk [vmem:[%s325 + $0xb8] sm:$0xff] %vm910, %v1079
        %1112 = vst.msk [vmem:[%s325 + $0xc0] sm:$0xff] %vm910, %v1080
        %1113 = vst.msk [vmem:[%s325 + $0xc8] sm:$0xff] %vm910, %v1081
        %1114 = vst.msk [vmem:[%s325 + $0xd0] sm:$0xff] %vm910, %v1082
        %1115 = vst.msk [vmem:[%s325 + $0xd8] sm:$0xff] %vm910, %v1083
        %1116 = vst.msk [vmem:[%s325 + $0xe0] sm:$0xff] %vm910, %v1084
        %1117 = vst.msk [vmem:[%s325 + $0xe8] sm:$0xff] %vm910, %v1085
        %1118 = vst.msk [vmem:[%s325 + $0xf0] sm:$0xff] %vm910, %v1086
        %1119 = vst.msk [vmem:[%s325 + $0xf8] sm:$0xff] %vm910, %v1087
      $region44: #{fused_matmul.1} parent=35 // pred_fallthru
        _
      %s1120 = smul.u32 32, %s21
      %p1121 = scmp.lt.s32.totalorder %s20, 1
      %s1122 = scalar_select %p1121, %s20, 1
      %p1123 = scmp.lt.s32.totalorder %s1120, 63
      %s1124 = scalar_select %p1123, %s1120, 63
      %s1125 = smul.addr %s1122, 64
      %s1126 = sadd.s32 %s1124, %s1125
      %s1127 = smul.addr %s1126, 8
      %s1128 = scalar_lea.vmem %s4, %s1127
      // Predicated region
      $region45: #{fused_matmul.1} parent=35 // pred_check
        %p1129 = pneg %p164
      $region46: #{fused_matmul.1} parent=35 // pred_check_branch
        %1131 = sbr.rel (%p1129) target = $region48
      $region47: #{fused_matmul.1} parent=35 // pred_region
        %s1132 = smul.u32 32, %s21
      $region48: #{fused_matmul.1} parent=35 // pred_fallthru
        _
    $region36: #{fused_matmul.1} parent=5 // pred_fallthru
      _
    %p1133 = scmp.le.s32.totalorder 2, %s10
    // Predicated region
    $region49: #{fused_matmul.1} parent=5 // pred_check
      %p1134 = pneg %p1133
    $region50: #{fused_matmul.1} parent=5 // pred_check_branch
      %1136 = sbr.rel (%p1134) target = $region52
    $region51: #{fused_matmul.1} parent=5 // pred_region
      %s1137 = ssub.s32 %s10, 2
      // Predicated region
      $region53: #{fused_matmul.1} parent=51 // pred_check
        %p1138 = pneg %p170
      $region54: #{fused_matmul.1} parent=51 // pred_check_branch
        %1140 = sbr.rel (%p1138) target = $region56
      $region55: #{fused_matmul.1} parent=51 // pred_region
        %s1141 = smul.u32 32, %s24
        %p1142 = scmp.lt.s32.totalorder %s23, 1
        %s1143 = scalar_select %p1142, %s23, 1
        %p1144 = scmp.lt.s32.totalorder %s1141, 63
        %s1145 = scalar_select %p1144, %s1141, 63
        %s1146 = smul.addr %s1143, 64
        %s1147 = sadd.s32 %s1145, %s1146
        %s1148 = smul.addr %s1147, 8
        %s1149 = scalar_lea.vmem %s4, %s1148
      $region56: #{fused_matmul.1} parent=51 // pred_fallthru
        _
    $region52: #{fused_matmul.1} parent=5 // pred_fallthru
      _
  $region6: #{fused_matmul.1} parent=0 // loop_footer
    %s14 = sadd.s32 1, %s10
  $region7: #{fused_matmul.1} parent=0 // loop_footer_branch
    %9 = sbr.rel target = $region3
  $region8: #{fused_matmul.1} parent=0 // loop_exit
    _

</llo_original>
